<compile_context>
chip_gen: v5e
topology: v5e:2x2
jax: 0.10.0
libtpu: 0.0.40
codegen_flags: <defaults>
</compile_context>

<pallas_src>
import math
import jax
import jax.numpy as jnp
from jax import lax
from jax.experimental import pallas as pl
from jax.experimental.pallas import tpu as pltpu


def _round_up(n, m):
    return ((n + m - 1) // m) * m


def _cdiv(a, b):
    return (a + b - 1) // b


def _erf(x):
    # Abramowitz & Stegun 7.1.26, |err| < 1.5e-7.  Uses only abs/exp/mul/add/where,
    # all of which lower cleanly in Mosaic (lax.erf has no guaranteed lowering rule).
    a = jnp.abs(x)
    t = 1.0 / (1.0 + 0.3275911 * a)
    poly = t * (0.254829592 + t * (-0.284496736 + t * (1.421413741
               + t * (-1.453152027 + t * 1.061405429))))
    y = 1.0 - poly * jnp.exp(-a * a)
    return jnp.where(x < 0.0, -y, y)


def _gelu_exact(x):
    # torch.nn.GELU() default (approximate='none'): 0.5*x*(1+erf(x/sqrt(2)))
    return 0.5 * x * (1.0 + _erf(x * 0.7071067811865476))


def _feature_kernel(x_ref, w1t_ref, b1_ref, w2_ref, b2_ref, o_ref):
    # x_ref  : (TM, D)  input rows (f32 or bf16)
    # w1t_ref: (H, D)   fc1 weight, pre-transposed, VMEM-resident
    # b1_ref : (H, 1)   fc1 bias (column)
    # w2_ref : (H, 1)   fc2 weight (column)
    # b2_ref : (1,)     fc2 bias scalar in SMEM
    # o_ref  : (1, TM)  lane-dense output row
    #
    # fc1 with rows-in-lanes: h[H, TM] = w1^T @ x^T (contract the minor D dims of
    # both operands -> one MXU matmul, f32 accumulation).  The row dimension lands
    # on the lane axis, so the final store is lane-dense (no narrow masked stores).
    h = lax.dot_general(
        w1t_ref[...], x_ref[...],
        dimension_numbers=(((1,), (1,)), ((), ())),
        preferred_element_type=jnp.float32,
    )
    h = h + b1_ref[...]
    h = _gelu_exact(h)
    # fc2 (H -> 1): VPU multiply + sublane (XLU) reduction -> (1, TM); MXU stays free.
    y = jnp.sum(h * w2_ref[...], axis=0, keepdims=True) + b2_ref[0]
    o_ref[...] = y.astype(o_ref.dtype)


def _choose_block_rows(m, d, itemsize, *, tile_bytes=2 << 20, max_rows=16384):
    # ~tile_bytes of x per tile, multiple of 128 (lane-dense output blocks).
    # Tiny inputs use one exact block; larger inputs keep >= 2 grid steps so the
    # "parallel" axis can shard across v7x's two TensorCores and pipelining kicks in.
    if m <= 128:
        return _round_up(m, 8)
    rows = max(128, (tile_bytes // max(d * itemsize, 1)) // 128 * 128)
    rows = min(rows, max_rows, _round_up(m, 128))
    if rows >= m:
        rows = max(128, _round_up(_cdiv(m, 2), 128))
    return int(rows)


def image_feature_extractor(x, w1, b1, w2, b2, *, use_bf16=False):
    """x: (B, S, D). Returns (B, S) = fc2(gelu(fc1(x))).squeeze(-1)."""
    B, S, D = x.shape
    H = w1.shape[1]
    M = B * S
    out_dtype = x.dtype

    x2d = x.reshape(M, D)
    w1t = jnp.transpose(w1)        # (H, D): kernel contracts the minor dims of both
    b1c = b1.reshape(H, 1)
    w2c = w2.reshape(H, 1)
    b2s = b2.reshape(1)

    if use_bf16:
        # Halves the dominant HBM read traffic on v6e/v7x (bf16-native MXU); the
        # accumulation and GELU/fc2 epilogue stay f32.  Slightly changes numerics
        # vs torch f32, so off by default.
        x2d = x2d.astype(jnp.bfloat16)
        w1t = w1t.astype(jnp.bfloat16)

    tm = _choose_block_rows(M, D, x2d.dtype.itemsize)
    num_tiles = _cdiv(M, tm)
    m_pad = num_tiles * tm

    out = pl.pallas_call(
        _feature_kernel,
        out_shape=jax.ShapeDtypeStruct((1, m_pad), out_dtype),
        grid=(num_tiles,),
        in_specs=[
            pl.BlockSpec((tm, D), lambda i: (i, 0)),            # x: pipelined row tiles
            pl.BlockSpec((H, D), lambda i: (0, 0)),             # w1^T: VMEM-resident
            pl.BlockSpec((H, 1), lambda i: (0, 0)),             # b1:   VMEM-resident
            pl.BlockSpec((H, 1), lambda i: (0, 0)),             # w2:   VMEM-resident
            pl.BlockSpec(memory_space=pltpu.MemorySpace.SMEM),  # b2 scalar in SMEM
        ],
        out_specs=pl.BlockSpec((1, tm), lambda i: (0, i)),      # lane-dense output row
        compiler_params=pltpu.CompilerParams(
            dimension_semantics=("parallel",),     # independent row tiles -> megacore
            vmem_limit_bytes=32 * 1024 * 1024,
        ),
    )(x2d, w1t, b1c, w2c, b2s)

    # Partial last tile: out-of-bounds rows flow through the (row-independent) math
    # into padding lanes only; they are dropped here.  Do not add cross-row reductions
    # inside the kernel tile without masking.
    return out[0, :M].reshape(B, S)


def _init_linear(key, in_dim, out_dim):
    # Deterministic init mimicking torch.nn.Linear (uniform +- 1/sqrt(in_dim)).
    kw, kb = jax.random.split(key)
    bound = 1.0 / math.sqrt(in_dim)
    w = jax.random.uniform(kw, (in_dim, out_dim), jnp.float32, -bound, bound)
    b = jax.random.uniform(kb, (out_dim,), jnp.float32, -bound, bound)
    return w, b


def _reference(x, w1, b1, w2, b2):
    h = jax.nn.gelu(jnp.dot(x, w1, precision=lax.Precision.HIGHEST) + b1,
                    approximate=False)
    return (jnp.dot(h, w2, precision=lax.Precision.HIGHEST) + b2)[..., 0]


if __name__ == "__main__":
    B, S, D, H = 2, 8, 32, 32  # batch, seq_len, dim, hidden_dim

    key = jax.random.PRNGKey(0)
    kx, k1, k2, k3 = jax.random.split(key, 4)

    x = jax.random.normal(kx, (B, S, D), jnp.float32)
    w1, b1 = _init_linear(k1, D, H)     # fc1: dim -> hidden_dim
    w2, b2 = _init_linear(k2, H, 1)     # fc2: hidden_dim -> 1
    # TODO(synk): fc3 (nn.Linear(seq_len, 1)) exists in __init__ but is unused in
    # forward(); intentionally not implemented.

    out = image_feature_extractor(x, w1, b1, w2, b2)
    out = jax.block_until_ready(out)

    ref = _reference(x, w1, b1, w2, b2)
    assert out.shape == (B, S), out.shape
    # Tolerance covers the MXU's default (reduced-precision) f32 matmul path; set
    # an explicit matmul precision if bit-level parity with torch f32 is required.
    assert jnp.allclose(out, ref, atol=1e-2, rtol=1e-2), "mismatch vs JAX reference"

    print("KERNEL_OK")
</pallas_src>

<mosaic_0001>
module attributes {stable_mosaic.version = 11 : i64} {
  func.func @_feature_kernel(%arg0: i32, %arg1: memref<16x32xf32, #tpu.memory_space<vmem>>, %arg2: memref<32x32xf32, #tpu.memory_space<vmem>>, %arg3: memref<32x1xf32, #tpu.memory_space<vmem>>, %arg4: memref<32x1xf32, #tpu.memory_space<vmem>>, %arg5: memref<1xf32, #tpu.memory_space<smem>>, %arg6: memref<1x16xf32, #tpu.memory_space<vmem>>) attributes {dimension_semantics = [#tpu.dimension_semantics<parallel>], iteration_bounds = array<i64: 1>, scalar_prefetch = 0 : i64, scratch_operands = 0 : i64, tpu.core_type = #tpu.core_type<tc>, window_params = [{transform_indices = @transform_0, window_bounds = array<i64: 16, 32>}, {pipeline_mode = #tpu.pipeline_mode<synchronous>, transform_indices = @transform_1, window_bounds = array<i64: 32, 32>}, {pipeline_mode = #tpu.pipeline_mode<synchronous>, transform_indices = @transform_2, window_bounds = array<i64: 32, 1>}, {pipeline_mode = #tpu.pipeline_mode<synchronous>, transform_indices = @transform_3, window_bounds = array<i64: 32, 1>}, {transform_indices = @transform_4, window_bounds = array<i64: 1>}, {transform_indices = @transform_5, window_bounds = array<i64: 1, 16>}]} {
    %c0 = arith.constant 0 : index
    %c0_0 = arith.constant 0 : index
    %0 = vector.load %arg2[%c0, %c0_0] : memref<32x32xf32, #tpu.memory_space<vmem>>, vector<32x32xf32>
    %c0_1 = arith.constant 0 : index
    %c0_2 = arith.constant 0 : index
    %1 = vector.load %arg1[%c0_1, %c0_2] : memref<16x32xf32, #tpu.memory_space<vmem>>, vector<16x32xf32>
    %cst = arith.constant dense<0.000000e+00> : vector<32x16xf32>
    %2 = tpu.matmul %0, %1, %cst {dimension_numbers = #tpu.dot_dimension_numbers<[1], [1], [0], [0], [0, 0, 1, 0], [], []>} : vector<32x32xf32>, vector<16x32xf32>, vector<32x16xf32> -> vector<32x16xf32>
    %c0_3 = arith.constant 0 : index
    %c0_4 = arith.constant 0 : index
    %3 = vector.load %arg3[%c0_3, %c0_4] : memref<32x1xf32, #tpu.memory_space<vmem>>, vector<32x1xf32>
    %4 = vector.broadcast %3 : vector<32x1xf32> to vector<32x16xf32>
    %5 = arith.addf %2, %4 : vector<32x16xf32>
    %cst_5 = arith.constant 5.000000e-01 : f32
    %6 = vector.broadcast %cst_5 : f32 to vector<32x16xf32>
    %7 = arith.mulf %6, %5 : vector<32x16xf32>
    %cst_6 = arith.constant 0.707106769 : f32
    %8 = vector.broadcast %cst_6 : f32 to vector<32x16xf32>
    %9 = arith.mulf %5, %8 : vector<32x16xf32>
    %10 = math.absf %9 : vector<32x16xf32>
    %cst_7 = arith.constant 0.327591091 : f32
    %11 = vector.broadcast %cst_7 : f32 to vector<32x16xf32>
    %12 = arith.mulf %11, %10 : vector<32x16xf32>
    %cst_8 = arith.constant 1.000000e+00 : f32
    %13 = vector.broadcast %cst_8 : f32 to vector<32x16xf32>
    %14 = arith.addf %13, %12 : vector<32x16xf32>
    %cst_9 = arith.constant 1.000000e+00 : f32
    %15 = vector.broadcast %cst_9 : f32 to vector<32x16xf32>
    %16 = arith.divf %15, %14 : vector<32x16xf32>
    %cst_10 = arith.constant 1.06140542 : f32
    %17 = vector.broadcast %cst_10 : f32 to vector<32x16xf32>
    %18 = arith.mulf %16, %17 : vector<32x16xf32>
    %cst_11 = arith.constant -1.45315206 : f32
    %19 = vector.broadcast %cst_11 : f32 to vector<32x16xf32>
    %20 = arith.addf %19, %18 : vector<32x16xf32>
    %21 = arith.mulf %16, %20 : vector<32x16xf32>
    %cst_12 = arith.constant 1.42141378 : f32
    %22 = vector.broadcast %cst_12 : f32 to vector<32x16xf32>
    %23 = arith.addf %22, %21 : vector<32x16xf32>
    %24 = arith.mulf %16, %23 : vector<32x16xf32>
    %cst_13 = arith.constant -0.284496725 : f32
    %25 = vector.broadcast %cst_13 : f32 to vector<32x16xf32>
    %26 = arith.addf %25, %24 : vector<32x16xf32>
    %27 = arith.mulf %16, %26 : vector<32x16xf32>
    %cst_14 = arith.constant 0.254829586 : f32
    %28 = vector.broadcast %cst_14 : f32 to vector<32x16xf32>
    %29 = arith.addf %28, %27 : vector<32x16xf32>
    %30 = arith.mulf %16, %29 : vector<32x16xf32>
    %cst_15 = arith.constant 0.000000e+00 : f32
    %31 = vector.broadcast %cst_15 : f32 to vector<32x16xf32>
    %32 = arith.subf %31, %10 : vector<32x16xf32>
    %33 = arith.mulf %32, %10 : vector<32x16xf32>
    %34 = math.exp %33 : vector<32x16xf32>
    %35 = arith.mulf %30, %34 : vector<32x16xf32>
    %cst_16 = arith.constant 1.000000e+00 : f32
    %36 = vector.broadcast %cst_16 : f32 to vector<32x16xf32>
    %37 = arith.subf %36, %35 : vector<32x16xf32>
    %cst_17 = arith.constant 0.000000e+00 : f32
    %38 = vector.broadcast %cst_17 : f32 to vector<32x16xf32>
    %39 = arith.cmpf olt, %9, %38 : vector<32x16xf32>
    %cst_18 = arith.constant 0.000000e+00 : f32
    %40 = vector.broadcast %cst_18 : f32 to vector<32x16xf32>
    %41 = arith.subf %40, %37 : vector<32x16xf32>
    %42 = arith.select %39, %41, %37 : vector<32x16xi1>, vector<32x16xf32>
    %cst_19 = arith.constant 1.000000e+00 : f32
    %43 = vector.broadcast %cst_19 : f32 to vector<32x16xf32>
    %44 = arith.addf %43, %42 : vector<32x16xf32>
    %45 = arith.mulf %7, %44 : vector<32x16xf32>
    %c0_20 = arith.constant 0 : index
    %c0_21 = arith.constant 0 : index
    %46 = vector.load %arg4[%c0_20, %c0_21] : memref<32x1xf32, #tpu.memory_space<vmem>>, vector<32x1xf32>
    %47 = vector.broadcast %46 : vector<32x1xf32> to vector<32x16xf32>
    %48 = arith.mulf %45, %47 : vector<32x16xf32>
    %cst_22 = arith.constant dense<0.000000e+00> : vector<16xf32>
    %49 = vector.multi_reduction <add>, %48, %cst_22 [0] : vector<32x16xf32> to vector<16xf32>
    %50 = vector.shape_cast %49 : vector<16xf32> to vector<1x16xf32>
    %c0_23 = arith.constant 0 : index
    %51 = memref.load %arg5[%c0_23] : memref<1xf32, #tpu.memory_space<smem>>
    %52 = vector.broadcast %51 : f32 to vector<1x16xf32>
    %53 = arith.addf %50, %52 : vector<1x16xf32>
    %c0_24 = arith.constant 0 : index
    %c0_25 = arith.constant 0 : index
    %54 = vector.load %arg6[%c0_24, %c0_25] : memref<1x16xf32, #tpu.memory_space<vmem>>, vector<1x16xf32>
    tpu.vector_store %arg6[%c0_24, %c0_25], %53 {strides = array<i32>} : memref<1x16xf32, #tpu.memory_space<vmem>>, vector<1x16xf32>,
    return
  }
  func.func @transform_0(%arg0: i32) -> (i32, i32) {
    %c0_i32 = arith.constant 0 : i32
    %c0_i32_0 = arith.constant 0 : i32
    return %arg0, %c0_i32 : i32, i32
  }
  func.func @transform_1(%arg0: i32) -> (i32, i32) {
    %c0_i32 = arith.constant 0 : i32
    %c0_i32_0 = arith.constant 0 : i32
    %c0_i32_1 = arith.constant 0 : i32
    return %c0_i32, %c0_i32_0 : i32, i32
  }
  func.func @transform_2(%arg0: i32) -> (i32, i32) {
    %c0_i32 = arith.constant 0 : i32
    %c0_i32_0 = arith.constant 0 : i32
    %c0_i32_1 = arith.constant 0 : i32
    return %c0_i32, %c0_i32_0 : i32, i32
  }
  func.func @transform_3(%arg0: i32) -> (i32, i32) {
    %c0_i32 = arith.constant 0 : i32
    %c0_i32_0 = arith.constant 0 : i32
    %c0_i32_1 = arith.constant 0 : i32
    return %c0_i32, %c0_i32_0 : i32, i32
  }
  func.func @transform_4(%arg0: i32) -> i32 {
    %c0_i32 = arith.constant 0 : i32
    %c0_i32_0 = arith.constant 0 : i32
    return %c0_i32 : i32
  }
  func.func @transform_5(%arg0: i32) -> (i32, i32) {
    %c0_i32 = arith.constant 0 : i32
    %c0_i32_0 = arith.constant 0 : i32
    return %c0_i32, %arg0 : i32, i32
  }
}

</mosaic_0001>

<llo_original>
// kernel: tpu_custom_call.1
$region0: #{tpu_custom_call.1}
  #allocation0 [shape = 'u32[]', space=smem, size = 0x4, offset = 0x4, fixed_abs, tag = 'smem constant byte address 0x4 - core index']
  #allocation1 [shape = 'u32[72,128]{1,0:T(1,128)}', space=vmem, size = 0x9000, scoped, tag = 'internal scratch']
  #allocation2 [shape = 'f32[1]{0:T(128)S(6)}', space=smem, size = 0x200, scoped, tag = 'scoped memory for tpu_custom_call.1']
  %s0 = inlined_call_operand.vmem [shape: f32[16,32], index: 0, kind: input, shape index: {}]
  %s1 = inlined_call_operand.vmem [shape: f32[32,32], index: 1, kind: input, shape index: {}]
  %s2 = inlined_call_operand.vmem [shape: f32[32,1], index: 2, kind: input, shape index: {}]
  %s3 = inlined_call_operand.vmem [shape: f32[32,1], index: 3, kind: input, shape index: {}]
  %s4 = inlined_call_operand.<no memory space> [shape: f32[1], index: 4, kind: input, shape index: {}]
  %s5 = inlined_call_operand.hbm [shape: f32[1,16], index: 5, kind: output, shape index: {}]
  %s6 = sld [smem:[#allocation0]]
  $region30: #{tpu_custom_call.1} parent=0
    _
  %s8 = ssub.s32 1, %s6
  %s9 = scalar_select 0, %s8, %s6
  %10 = sst [smem:[#allocation2]] %s4
  $region1: #{tpu_custom_call.1} parent=0
    #allocation3 [shape = 'u8[512]{0}', space=vmem, size = 0x400, scoped, tag = 'output window, operand 0, single buffered']
    #allocation4 [shape = 's32[1]{0}', space=sflag, size = 0x4, scoped, tag = 'scoped memory for tpu_custom_call.1']
    %11 = vsyncpa [#allocation4], 0
    // Predicated region
    $region2: #{tpu_custom_call.1} parent=1 // pred_check
      _
    $region3: #{tpu_custom_call.1} parent=1 // pred_check_branch
      %13 = sbr.rel (0) target = $region5
    $region4: #{tpu_custom_call.1} parent=1 // pred_region
      _
    $region5: #{tpu_custom_call.1} parent=1 // pred_fallthru
      _
    // Predicated region
    $region6: #{tpu_custom_call.1} parent=1 // pred_check
      _
    $region7: #{tpu_custom_call.1} parent=1 // pred_check_branch
      %15 = sbr.rel (0) target = $region9
    $region8: #{tpu_custom_call.1} parent=1 // pred_region
      _
    $region9: #{tpu_custom_call.1} parent=1 // pred_fallthru
      _
    // Predicated region
    $region10: #{tpu_custom_call.1} parent=1 // pred_check
      _
    $region11: #{tpu_custom_call.1} parent=1 // pred_check_branch
      %17 = sbr.rel (0) target = $region13
    $region12: #{tpu_custom_call.1} parent=1 // pred_region
      _
    $region13: #{tpu_custom_call.1} parent=1 // pred_fallthru
      _
    // Predicated region
    $region14: #{tpu_custom_call.1} parent=1 // pred_check
      _
    $region15: #{tpu_custom_call.1} parent=1 // pred_check_branch
      %19 = sbr.rel (0) target = $region17
    $region16: #{tpu_custom_call.1} parent=1 // pred_region
      _
    $region17: #{tpu_custom_call.1} parent=1 // pred_fallthru
      _
    // Predicated region
    $region18: #{tpu_custom_call.1} parent=1 // pred_check
      _
    $region19: #{tpu_custom_call.1} parent=1 // pred_check_branch
      %21 = sbr.rel (0) target = $region21
    $region20: #{tpu_custom_call.1} parent=1 // pred_region
      _
    $region21: #{tpu_custom_call.1} parent=1 // pred_fallthru
      _
    %v22 = vld [vmem:[%s1] sm:$0xff]
    %v23 = vld [vmem:[%s1 + $0x8] sm:$0xff]
    %v24 = vld [vmem:[%s1 + $0x10] sm:$0xff]
    %v25 = vld [vmem:[%s1 + $0x18] sm:$0xff]
    %v26 = vld [vmem:[%s0] sm:$0xff]
    %v27 = vld [vmem:[%s0 + $0x8] sm:$0xff]
    %v28 = vld [vmem:[%s2] sm:$0xff]
    %v29 = vld [vmem:[%s2 + $0x8] sm:$0xff]
    %v30 = vld [vmem:[%s2 + $0x10] sm:$0xff]
    %v31 = vld [vmem:[%s2 + $0x18] sm:$0xff]
    %33 = vset.pattern.permute.xlu0 0
    %34 = vperm.xlu0 %33, %v28
    %v35 = vpop.permute.xlu0 %34
    %38 = vset.pattern.permute.xlu0 0
    %39 = vperm.xlu0 %38, %v29
    %v40 = vpop.permute.xlu0 %39
    %43 = vset.pattern.permute.xlu0 0
    %44 = vperm.xlu0 %43, %v30
    %v45 = vpop.permute.xlu0 %44
    %48 = vset.pattern.permute.xlu0 0
    %49 = vperm.xlu0 %48, %v31
    %v50 = vpop.permute.xlu0 %49
    %vm52 = vcmask 261120
    %v54 = vsel %vm52, %v22, 0
    %v57 = vsel %vm52, %v23, 0
    %v60 = vsel %vm52, %v24, 0
    %v63 = vsel %vm52, %v25, 0
    %v66 = vsel %vm52, %v26, 0
    %v69 = vsel %vm52, %v27, 0
    %71 = vmatpush.xpose.msra.mxu0 0.0
    %72 = vmatpush.xpose.msra.mxu0 0.0
    %73 = vmatpush.xpose.msra.mxu0 0.0
    %74 = vmatpush.xpose.msra.mxu0 0.0
    %75 = vmatpush.xpose.msra.mxu0 0.0
    %76 = vmatpush.xpose.msra.mxu0 0.0
    %77 = vmatpush.xpose.msra.mxu0 0.0
    %78 = vmatpush.xpose.msra.mxu0 0.0
    %79 = vmatpush.xpose.msra.mxu0 0.0
    %80 = vmatpush.xpose.msra.mxu0 0.0
    %81 = vmatpush.xpose.msra.mxu0 0.0
    %82 = vmatpush.xpose.msra.mxu0 0.0
    %83 = vmatpush.xpose.msra.mxu0 0.0
    %84 = vmatpush.xpose.msra.mxu0 0.0
    %85 = vmatpush.xpose.msra.mxu0 %v69
    %86 = vmatpush.xpose.msra.mxu0 %v66
    %87 = vmatmul.f32.gmra.mxu0 %v54
    %v88 = vpop.f32.mrf.mxu0
    %v89 = vadd.f32 %v35, %v88
    %90 = vmatmul.f32.gmra.mxu0 %v57
    %v91 = vpop.f32.mrf.mxu0
    %v92 = vadd.f32 %v40, %v91
    %93 = vmatmul.f32.gmra.mxu0 %v60
    %v94 = vpop.f32.mrf.mxu0
    %v95 = vadd.f32 %v45, %v94
    %96 = vmatmul.f32.gmra.mxu0 %v63
    %v97 = vpop.f32.mrf.mxu0
    %v98 = vadd.f32 %v50, %v97
    %99 = vdwg.mxu0
    %v100 = vmul.f32 %v89, 0.5
    %v101 = vmul.f32 %v92, 0.5
    %v102 = vmul.f32 %v95, 0.5
    %v103 = vmul.f32 %v98, 0.5
    %v104 = vmul.f32 %v89, 0.70710677
    %v105 = vmul.f32 %v92, 0.70710677
    %v106 = vmul.f32 %v95, 0.70710677
    %v107 = vmul.f32 %v98, 0.70710677
    %v108 = vand.u32 2147483647, %v104
    %v109 = vand.u32 2147483647, %v105
    %v110 = vand.u32 2147483647, %v106
    %v111 = vand.u32 2147483647, %v107
    %v112 = vmul.f32 %v108, 0.3275911
    %v113 = vmul.f32 %v109, 0.3275911
    %v114 = vmul.f32 %v110, 0.3275911
    %v115 = vmul.f32 %v111, 0.3275911
    %v116 = vadd.f32 %v112, 1.0
    %v117 = vadd.f32 %v113, 1.0
    %v118 = vadd.f32 %v114, 1.0
    %v119 = vadd.f32 %v115, 1.0
    %v120 = vrcp.pop %v116
    %v121 = vmul.f32 %v116, %v120
    %v122 = vsub.f32 1.0, %v121
    %v123 = vmul.f32 %v120, %v122
    %v124 = vadd.f32 %v120, %v123
    %vm125 = vweird.f32 %v116
    %vm126 = vweird.f32 %v120
    %vm127 = vmor %vm125, %vm126
    %v128 = vsel %vm127, %v120, %v124
    %v129 = vand.u32 2147483647, %v116
    %vm130 = vcmp.eq.f32.partialorder %v129, 8.507059e+37
    %v131 = vand.u32 %v116, 2147483648
    %v132 = vor.u32 1.1754944e-38, %v131
    %v133 = vsel %vm130, %v132, %v128
    %v134 = vmul.f32 1.0, %v133
    %v135 = vrcp.pop %v117
    %v136 = vmul.f32 %v117, %v135
    %v137 = vsub.f32 1.0, %v136
    %v138 = vmul.f32 %v135, %v137
    %v139 = vadd.f32 %v135, %v138
    %vm140 = vweird.f32 %v117
    %vm141 = vweird.f32 %v135
    %vm142 = vmor %vm140, %vm141
    %v143 = vsel %vm142, %v135, %v139
    %v144 = vand.u32 2147483647, %v117
    %vm145 = vcmp.eq.f32.partialorder %v144, 8.507059e+37
    %v146 = vand.u32 %v117, 2147483648
    %v147 = vor.u32 1.1754944e-38, %v146
    %v148 = vsel %vm145, %v147, %v143
    %v149 = vmul.f32 1.0, %v148
    %v150 = vrcp.pop %v118
    %v151 = vmul.f32 %v118, %v150
    %v152 = vsub.f32 1.0, %v151
    %v153 = vmul.f32 %v150, %v152
    %v154 = vadd.f32 %v150, %v153
    %vm155 = vweird.f32 %v118
    %vm156 = vweird.f32 %v150
    %vm157 = vmor %vm155, %vm156
    %v158 = vsel %vm157, %v150, %v154
    %v159 = vand.u32 2147483647, %v118
    %vm160 = vcmp.eq.f32.partialorder %v159, 8.507059e+37
    %v161 = vand.u32 %v118, 2147483648
    %v162 = vor.u32 1.1754944e-38, %v161
    %v163 = vsel %vm160, %v162, %v158
    %v164 = vmul.f32 1.0, %v163
    %v165 = vrcp.pop %v119
    %v166 = vmul.f32 %v119, %v165
    %v167 = vsub.f32 1.0, %v166
    %v168 = vmul.f32 %v165, %v167
    %v169 = vadd.f32 %v165, %v168
    %vm170 = vweird.f32 %v119
    %vm171 = vweird.f32 %v165
    %vm172 = vmor %vm170, %vm171
    %v173 = vsel %vm172, %v165, %v169
    %v174 = vand.u32 2147483647, %v119
    %vm175 = vcmp.eq.f32.partialorder %v174, 8.507059e+37
    %v176 = vand.u32 %v119, 2147483648
    %v177 = vor.u32 1.1754944e-38, %v176
    %v178 = vsel %vm175, %v177, %v173
    %v179 = vmul.f32 1.0, %v178
    %v180 = vmul.f32 %v134, 1.0614054
    %v181 = vmul.f32 %v149, 1.0614054
    %v182 = vmul.f32 %v164, 1.0614054
    %v183 = vmul.f32 %v179, 1.0614054
    %v184 = vadd.f32 %v180, -1.4531521
    %v185 = vadd.f32 %v181, -1.4531521
    %v186 = vadd.f32 %v182, -1.4531521
    %v187 = vadd.f32 %v183, -1.4531521
    %v188 = vmul.f32 %v134, %v184
    %v189 = vmul.f32 %v149, %v185
    %v190 = vmul.f32 %v164, %v186
    %v191 = vmul.f32 %v179, %v187
    %v192 = vadd.f32 %v188, 1.4214138
    %v193 = vadd.f32 %v189, 1.4214138
    %v194 = vadd.f32 %v190, 1.4214138
    %v195 = vadd.f32 %v191, 1.4214138
    %v196 = vmul.f32 %v134, %v192
    %v197 = vmul.f32 %v149, %v193
    %v198 = vmul.f32 %v164, %v194
    %v199 = vmul.f32 %v179, %v195
    %v200 = vadd.f32 %v196, -0.28449672
    %v201 = vadd.f32 %v197, -0.28449672
    %v202 = vadd.f32 %v198, -0.28449672
    %v203 = vadd.f32 %v199, -0.28449672
    %v204 = vmul.f32 %v134, %v200
    %v205 = vmul.f32 %v149, %v201
    %v206 = vmul.f32 %v164, %v202
    %v207 = vmul.f32 %v179, %v203
    %v208 = vadd.f32 %v204, 0.2548296
    %v209 = vadd.f32 %v205, 0.2548296
    %v210 = vadd.f32 %v206, 0.2548296
    %v211 = vadd.f32 %v207, 0.2548296
    %v212 = vmul.f32 %v134, %v208
    %v213 = vmul.f32 %v149, %v209
    %v214 = vmul.f32 %v164, %v210
    %v215 = vmul.f32 %v179, %v211
    %v216 = vsub.f32 0.0, %v108
    %v217 = vsub.f32 0.0, %v109
    %v218 = vsub.f32 0.0, %v110
    %v219 = vsub.f32 0.0, %v111
    %v220 = vmul.f32 %v216, %v108
    %v221 = vmul.f32 %v217, %v109
    %v222 = vmul.f32 %v218, %v110
    %v223 = vmul.f32 %v219, %v111
    %v224 = vmul.f32 %v220, 1.442695
    %v225 = vpow.pop %v224
    %v226 = vmul.f32 %v221, 1.442695
    %v227 = vpow.pop %v226
    %v228 = vmul.f32 %v222, 1.442695
    %v229 = vpow.pop %v228
    %v230 = vmul.f32 %v223, 1.442695
    %v231 = vpow.pop %v230
    %v232 = vmul.f32 %v212, %v225
    %v233 = vmul.f32 %v213, %v227
    %v234 = vmul.f32 %v214, %v229
    %v235 = vmul.f32 %v215, %v231
    %v236 = vsub.f32 1.0, %v232
    %v237 = vsub.f32 1.0, %v233
    %v238 = vsub.f32 1.0, %v234
    %v239 = vsub.f32 1.0, %v235
    %vm240 = vcmp.lt.f32.partialorder %v104, 0.0
    %vm241 = vcmp.lt.f32.partialorder %v105, 0.0
    %vm242 = vcmp.lt.f32.partialorder %v106, 0.0
    %vm243 = vcmp.lt.f32.partialorder %v107, 0.0
    %v244 = vsub.f32 0.0, %v236
    %v245 = vsub.f32 0.0, %v237
    %v246 = vsub.f32 0.0, %v238
    %v247 = vsub.f32 0.0, %v239
    %v248 = vsel %vm240, %v244, %v236
    %v249 = vsel %vm241, %v245, %v237
    %v250 = vsel %vm242, %v246, %v238
    %v251 = vsel %vm243, %v247, %v239
    %v252 = vadd.f32 %v248, 1.0
    %v253 = vadd.f32 %v249, 1.0
    %v254 = vadd.f32 %v250, 1.0
    %v255 = vadd.f32 %v251, 1.0
    %v256 = vmul.f32 %v100, %v252
    %v257 = vmul.f32 %v101, %v253
    %v258 = vmul.f32 %v102, %v254
    %v259 = vmul.f32 %v103, %v255
    %v260 = vld [vmem:[%s3] sm:$0xff]
    %v261 = vld [vmem:[%s3 + $0x8] sm:$0xff]
    %v262 = vld [vmem:[%s3 + $0x10] sm:$0xff]
    %v263 = vld [vmem:[%s3 + $0x18] sm:$0xff]
    %265 = vset.pattern.permute.xlu0 0
    %266 = vperm.xlu0 %265, %v260
    %v267 = vpop.permute.xlu0 %266
    %270 = vset.pattern.permute.xlu0 0
    %271 = vperm.xlu0 %270, %v261
    %v272 = vpop.permute.xlu0 %271
    %275 = vset.pattern.permute.xlu0 0
    %276 = vperm.xlu0 %275, %v262
    %v277 = vpop.permute.xlu0 %276
    %280 = vset.pattern.permute.xlu0 0
    %281 = vperm.xlu0 %280, %v263
    %v282 = vpop.permute.xlu0 %281
    %v284 = vmul.f32 %v256, %v267
    %v285 = vmul.f32 %v257, %v272
    %v286 = vmul.f32 %v258, %v277
    %v287 = vmul.f32 %v259, %v282
    %vm288 = vcmask 130048
    %v289 = vsel %vm288, %v284, 0.0
    %v290 = vsel %vm288, %v285, 0.0
    %v291 = vadd.f32 %v289, %v290
    %v292 = vsel %vm288, %v286, 0.0
    %v293 = vadd.f32 %v291, %v292
    %v294 = vsel %vm288, %v287, 0.0
    %v295 = vadd.f32 %v293, %v294
    %v296 = vrot.slane %v295, 4
    %v297 = vadd.f32 %v295, %v296
    %v298 = vrot.slane %v297, 2
    %v299 = vadd.f32 %v297, %v298
    %v300 = vrot.slane %v299, 1
    %v301 = vadd.f32 %v299, %v300
    %s302 = sld [smem:[#allocation2]]
    %v303 = vstv %s302
    %v304 = vadd.f32 %v301, %v303
    %vm305 = vcmask 122880
    %306 = vst.msk [vmem:[#allocation3] sm:$0x1] %vm305, %v304
    // Predicated region
    $region22: #{tpu_custom_call.1} parent=1 // pred_check
      _
    $region23: #{tpu_custom_call.1} parent=1 // pred_check_branch
      %308 = sbr.rel (0) target = $region25
    $region24: #{tpu_custom_call.1} parent=1 // pred_region
      %310 = vsyncadd [#allocation4], 0
      %s312 = sshll.u32 [#allocation3], 4
      %s313 = int_to_ptr.vmem [resolvable:$true] %s312
      %s314 = sshll.u32 %s5, 4
      %s315 = int_to_ptr.hbm [resolvable:$true] %s314
      %317 = dma.vmem_to_hbm [thread:$0]  %s313, 16, %s315, [#allocation4]
    $region25: #{tpu_custom_call.1} parent=1 // pred_fallthru
      _
    // Predicated region
    $region26: #{tpu_custom_call.1} parent=1 // pred_check
      _
    $region27: #{tpu_custom_call.1} parent=1 // pred_check_branch
      %319 = sbr.rel (0) target = $region29
    $region28: #{tpu_custom_call.1} parent=1 // pred_region
      %321 = dma.done [#allocation4], 16
    $region29: #{tpu_custom_call.1} parent=1 // pred_fallthru
      _
    %322 = vsyncpa [#allocation4], 1

</llo_original>
